<compile_context>
chip_gen: v5e
topology: v5e:2x2
jax: 0.10.0
libtpu: 0.0.40
codegen_flags: <defaults>
</compile_context>

<pallas_src>
import functools

import jax
import jax.numpy as jnp
from jax import lax
from jax.experimental import pallas as pl
from jax.experimental.pallas import tpu as pltpu


# MXU operand dtype: bf16 operands with f32 accumulation (review item 1).
_MXU_DTYPE = jnp.bfloat16

# With bf16 operands the kron-folded path stays memory-bound up to s=32 on
# v5e/v6e/v7x (review item 5); above that use the separable bilinear fallback.
_KRON_MAX_S = 32

# ~2 MiB x-blocks reach ~85% of HBM roofline (measured tile sweep); cap planes/step.
_TARGET_BLOCK_BYTES = 2 * 1024 * 1024
_MAX_T = 2048

# Scoped VMEM request; within every generation's capability (v5e/v6e phys 128 MiB,
# v7x phys 64 MiB / 32 MiB default scoped).
_VMEM_LIMIT_BYTES = 32 * 1024 * 1024


def _dct_matrix(n: int) -> jnp.ndarray:
    """Orthonormal DCT-II matrix A of shape (n, n): A[k, i]."""
    k = jnp.arange(n, dtype=jnp.float32)[:, None]
    i = jnp.arange(n, dtype=jnp.float32)[None, :]
    a = jnp.cos(jnp.pi * (2.0 * i + 1.0) * k / (2.0 * n))
    scale = jnp.where(k == 0, jnp.sqrt(1.0 / n), jnp.sqrt(2.0 / n))
    return (scale * a).astype(jnp.float32)


def _obe_basis(n: int, key) -> jnp.ndarray:
    """Deterministic orthonormal basis (stand-in for the learned OBE basis)."""
    g = jax.random.normal(key, (n, n), dtype=jnp.float32)
    q, _ = jnp.linalg.qr(g)
    return q.astype(jnp.float32)


def _round_up(x: int, m: int) -> int:
    return (x + m - 1) // m * m


def _choose_tile(p: int, t_cap: int):
    """Planes (rows) per grid step.

    Picks a multiple-of-8 divisor of p (so no whole-tensor pad is needed and the
    (8, 128) block constraint holds), <= t_cap, preferring >= 2 grid steps so both
    v7x TensorCores get work.  Returns None when a pad is unavoidable
    (p not a multiple of 8 and larger than t_cap).  For very small p a single
    full-array block is used (the op is launch/latency-bound there anyway).
    """
    if p <= 8:
        return p                      # single block == full array (no 8-multiple rule)
    if p % 8 != 0:
        return p if p <= t_cap else None
    upper = min(t_cap, p // 2)        # >= 2 steps when possible (v7x dual-TC)
    t = (upper // 8) * 8
    while t >= 8:
        if p % t == 0:
            return t
        t -= 8
    return p if p <= t_cap else None


# ---------------------------------------------------------------------------
# Kernels
# ---------------------------------------------------------------------------

def _obe_kron_kernel(kt_ref, x_ref, o_ref):
    # kt_ref: (W, W)  resident operator kron(I_g, kron(B, B))^T, bf16, single VMEM copy
    # x_ref : (T, W)  lane-dense rows of flattened planes (g planes packed per row)
    # o_ref : (T, W)  flattened coefficient planes (lane-dense store)
    x = x_ref[...].astype(kt_ref.dtype)          # per-tile cast on VMEM (VPU, cheap)
    o_ref[...] = jnp.dot(
        x, kt_ref[...], preferred_element_type=jnp.float32
    ).astype(o_ref.dtype)


def _obe_bilinear_kernel(b_ref, x_ref, o_ref):
    # Fallback for large img_size.
    # b_ref: (s, s) basis B, bf16, resident (single VMEM copy).
    # x_ref/o_ref: (T, s, s) blocks of planes.  The kernel stores coe^T per plane
    # (o[t, l, i] = coe[t, i, l]); the output-side per-plane transpose is done once
    # by XLA outside so the in-kernel store stays a plain full-block vst.
    t, s, _ = x_ref.shape
    b = b_ref[...]
    x2 = x_ref[...].astype(b.dtype).reshape(t * s, s)            # rows (q, j), cols k
    # u[(q, j), l] = sum_k x[q, j, k] * B[l, k]          (== X @ B^T per plane)
    u2 = lax.dot_general(x2, b, (((1,), (1,)), ((), ())),
                         preferred_element_type=jnp.float32)
    # Mid per-plane transpose (the one transpose that is inherent to the separable
    # two-matmul formulation): rows become (q, l).
    v2 = jnp.swapaxes(u2.reshape(t, s, s), 1, 2).astype(b.dtype).reshape(t * s, s)
    # w[(q, l), i] = sum_j v[q, l, j] * B[i, j] = coe[q, i, l]
    w2 = lax.dot_general(v2, b, (((1,), (1,)), ((), ())),
                         preferred_element_type=jnp.float32)
    o_ref[...] = w2.reshape(t, s, s).astype(o_ref.dtype)         # stores coe^T


# ---------------------------------------------------------------------------
# Wrappers
# ---------------------------------------------------------------------------

def _forward_kron(x, basis):
    n, c, s, _ = x.shape
    p = n * c
    ss = s * s
    itemsize = x.dtype.itemsize

    # Lane packing for tiny planes (s*s < 128): g planes per row + block-diagonal
    # operator keep loads/stores full-lane-width (unmasked vst).
    g = max(1, 128 // ss)
    if g > 1 and p % g != 0:
        g = 1
    rows = p // g
    w = g * ss

    t_cap = max(8, min(_MAX_T, _TARGET_BLOCK_BYTES // (w * itemsize) // 8 * 8))

    x2 = x.reshape(rows, w)              # contiguous reshape: no HBM copy

    # Folded separable operator, block-diagonal over packed planes, pre-transposed
    # so the kernel is a single x @ KT matmul; cast once (outside) to bf16.
    kt = jnp.kron(basis, basis)
    if g > 1:
        kt = jnp.kron(jnp.eye(g, dtype=kt.dtype), kt)
    kt = kt.T.astype(_MXU_DTYPE)

    t = _choose_tile(rows, t_cap)
    if t is None:
        # Rare ragged fallback: pad, and keep the [:rows] slice so padded rows
        # never reach the output.
        t = t_cap
        rows_pad = _round_up(rows, t)
        x2 = jnp.pad(x2, ((0, rows_pad - rows), (0, 0)))
    else:
        rows_pad = rows
    grid = rows_pad // t

    cost = pl.CostEstimate(
        flops=2 * rows_pad * w * w,
        transcendentals=0,
        bytes_accessed=2 * rows_pad * w * itemsize + w * w * 2,
    )

    out2 = pl.pallas_call(
        _obe_kron_kernel,
        out_shape=jax.ShapeDtypeStruct((rows_pad, w), x.dtype),
        grid_spec=pltpu.PrefetchScalarGridSpec(
            num_scalar_prefetch=0,
            grid=(grid,),
            in_specs=[
                # Operator: whole array resident in VMEM, single copy (no per-step
                # double-buffering of a never-changing input).
                pl.BlockSpec(memory_space=pltpu.MemorySpace.VMEM),
                pl.BlockSpec((t, w), lambda i: (i, 0)),      # T lane-dense rows
            ],
            out_specs=pl.BlockSpec((t, w), lambda i: (i, 0)),
        ),
        compiler_params=pltpu.CompilerParams(
            dimension_semantics=("parallel",),
            vmem_limit_bytes=_VMEM_LIMIT_BYTES),
        cost_estimate=cost,
    )(kt, x2)

    if rows_pad != rows:
        out2 = out2[:rows]
    return out2.reshape(n, c, s, s)


def _forward_bilinear(x, basis):
    n, c, s, _ = x.shape
    p = n * c
    itemsize = x.dtype.itemsize
    # In-kernel temporaries (u2/v2/w2) are ~2.5 extra copies of the f32 block, so
    # keep the x block near the ~2 MiB sweet spot and rely on vmem_limit_bytes.
    t_cap = max(8, min(_MAX_T, _TARGET_BLOCK_BYTES // (s * s * itemsize) // 8 * 8))

    x3 = x.reshape(p, s, s)
    t = _choose_tile(p, t_cap)
    if t is None:
        t = t_cap
        p_pad = _round_up(p, t)
        x3 = jnp.pad(x3, ((0, p_pad - p), (0, 0), (0, 0)))
    else:
        p_pad = p
    grid = p_pad // t

    cost = pl.CostEstimate(
        flops=4 * p_pad * s * s * s,
        transcendentals=0,
        bytes_accessed=2 * p_pad * s * s * itemsize + s * s * 2,
    )

    out3 = pl.pallas_call(
        _obe_bilinear_kernel,
        out_shape=jax.ShapeDtypeStruct((p_pad, s, s), x.dtype),
        grid_spec=pltpu.PrefetchScalarGridSpec(
            num_scalar_prefetch=0,
            grid=(grid,),
            in_specs=[
                pl.BlockSpec(memory_space=pltpu.MemorySpace.VMEM),   # B resident
                pl.BlockSpec((t, s, s), lambda i: (i, 0, 0)),
            ],
            out_specs=pl.BlockSpec((t, s, s), lambda i: (i, 0, 0)),
        ),
        compiler_params=pltpu.CompilerParams(
            dimension_semantics=("parallel",),
            vmem_limit_bytes=_VMEM_LIMIT_BYTES),
        cost_estimate=cost,
    )(basis.astype(_MXU_DTYPE), x3)

    if p_pad != p:
        out3 = out3[:p]
    # Kernel wrote coe^T per plane; one cheap XLA transpose fixes it up and keeps
    # the in-kernel store lane-dense / unmasked.
    return jnp.swapaxes(out3, 1, 2).reshape(n, c, s, s)


@jax.jit
def obe_head_forward(x: jnp.ndarray, basis: jnp.ndarray) -> jnp.ndarray:
    """coe[n, c] = basis @ x[n, c] @ basis^T   (NCHW in, NCHW out)."""
    n, c, h, w = x.shape
    s = basis.shape[0]
    assert h == w == s == basis.shape[1]
    basis = basis.astype(jnp.float32)
    if s <= _KRON_MAX_S:
        return _forward_kron(x, basis)
    return _forward_bilinear(x, basis)


def make_obe_head(img_size: int, model_type: str, key):
    """Builds the deterministic basis ('parameters') and returns a forward fn."""
    if model_type == "DCT":
        basis = _dct_matrix(img_size)
    elif model_type == "OBE":
        basis = _obe_basis(img_size, key)
    else:
        raise ValueError(model_type)
    return functools.partial(obe_head_forward, basis=basis)


if __name__ == "__main__":
    key = jax.random.PRNGKey(0)
    k_x, k_w = jax.random.split(key)

    def ref(xv, bv):
        return jnp.einsum("ij,ncjk,lk->ncil", bv, xv, bv)

    # bf16 MXU operands (f32 accumulation) => tolerance loosened vs the pure-f32
    # reference, per the review's correctness note.
    ATOL = RTOL = 5e-2

    # --- kron path, img_size=16, small batch (DCT and OBE branches) ---
    batch, channels, img_size = 2, 4, 16
    x = jax.random.normal(k_x, (batch, channels, img_size, img_size), jnp.float32)

    fwd_dct = make_obe_head(img_size, "DCT", k_w)
    coe_dct = jax.block_until_ready(fwd_dct(x))
    a16 = _dct_matrix(img_size)
    assert coe_dct.shape == x.shape
    assert jnp.allclose(coe_dct, ref(x, a16), atol=ATOL, rtol=RTOL)

    fwd_obe = make_obe_head(img_size, "OBE", k_w)
    coe_obe = jax.block_until_ready(fwd_obe(x))
    q16 = _obe_basis(img_size, k_w)
    assert coe_obe.shape == x.shape
    assert jnp.allclose(coe_obe, ref(x, q16), atol=ATOL, rtol=RTOL)

    # --- kron path, larger plane count -> grid of >= 2 steps (v7x dual-TC split) ---
    x_big = jax.random.normal(jax.random.PRNGKey(1), (4, 8, 16, 16), jnp.float32)
    coe_big = jax.block_until_ready(fwd_dct(x_big))
    assert jnp.allclose(coe_big, ref(x_big, a16), atol=ATOL, rtol=RTOL)

    # --- kron path, tiny planes (img_size=8): 2 planes packed per lane-dense row ---
    x8 = jax.random.normal(jax.random.PRNGKey(2), (2, 4, 8, 8), jnp.float32)
    fwd8 = make_obe_head(8, "DCT", k_w)
    coe8 = jax.block_until_ready(fwd8(x8))
    assert jnp.allclose(coe8, ref(x8, _dct_matrix(8)), atol=ATOL, rtol=RTOL)

    # --- bilinear fallback path (img_size=128 > _KRON_MAX_S) ---
    x128 = jax.random.normal(jax.random.PRNGKey(3), (2, 4, 128, 128), jnp.float32)
    fwd128 = make_obe_head(128, "DCT", k_w)
    coe128 = jax.block_until_ready(fwd128(x128))
    assert jnp.allclose(coe128, ref(x128, _dct_matrix(128)), atol=ATOL, rtol=RTOL)

    print("KERNEL_OK")
</pallas_src>

<mosaic_0001>
module attributes {stable_mosaic.version = 11 : i64} {
  func.func @_obe_kron_kernel(%arg0: i32, %arg1: memref<256x256xbf16, #tpu.memory_space<vmem>>, %arg2: memref<8x256xf32, #tpu.memory_space<vmem>>, %arg3: memref<8x256xf32, #tpu.memory_space<vmem>>) attributes {dimension_semantics = [#tpu.dimension_semantics<parallel>], iteration_bounds = array<i64: 1>, scalar_prefetch = 0 : i64, scratch_operands = 0 : i64, tpu.core_type = #tpu.core_type<tc>, window_params = [{pipeline_mode = #tpu.pipeline_mode<synchronous>, transform_indices = @transform_0, window_bounds = array<i64: 256, 256>}, {transform_indices = @transform_1, window_bounds = array<i64: 8, 256>}, {transform_indices = @transform_2, window_bounds = array<i64: 8, 256>}]} {
    %c0 = arith.constant 0 : index
    %c0_0 = arith.constant 0 : index
    %0 = vector.load %arg2[%c0, %c0_0] : memref<8x256xf32, #tpu.memory_space<vmem>>, vector<8x256xf32>
    %1 = arith.truncf %0 : vector<8x256xf32> to vector<8x256xbf16>
    %c0_1 = arith.constant 0 : index
    %c0_2 = arith.constant 0 : index
    %2 = vector.load %arg1[%c0_1, %c0_2] : memref<256x256xbf16, #tpu.memory_space<vmem>>, vector<256x256xbf16>
    %cst = arith.constant dense<0.000000e+00> : vector<8x256xf32>
    %3 = tpu.matmul %1, %2, %cst {dimension_numbers = #tpu.dot_dimension_numbers<[1], [0], [0], [1], [0, 0, 1, 1], [], []>} : vector<8x256xbf16>, vector<256x256xbf16>, vector<8x256xf32> -> vector<8x256xf32>
    %c0_3 = arith.constant 0 : index
    %c0_4 = arith.constant 0 : index
    %4 = vector.load %arg3[%c0_3, %c0_4] : memref<8x256xf32, #tpu.memory_space<vmem>>, vector<8x256xf32>
    tpu.vector_store %arg3[%c0_3, %c0_4], %3 {strides = array<i32>} : memref<8x256xf32, #tpu.memory_space<vmem>>, vector<8x256xf32>,
    return
  }
  func.func @transform_0(%arg0: i32) -> (i32, i32) {
    %c0_i32 = arith.constant 0 : i32
    %c0_i32_0 = arith.constant 0 : i32
    %c0_i32_1 = arith.constant 0 : i32
    return %c0_i32, %c0_i32_0 : i32, i32
  }
  func.func @transform_1(%arg0: i32) -> (i32, i32) {
    %c0_i32 = arith.constant 0 : i32
    %c0_i32_0 = arith.constant 0 : i32
    return %arg0, %c0_i32 : i32, i32
  }
  func.func @transform_2(%arg0: i32) -> (i32, i32) {
    %c0_i32 = arith.constant 0 : i32
    %c0_i32_0 = arith.constant 0 : i32
    return %arg0, %c0_i32 : i32, i32
  }
}

</mosaic_0001>

<llo_original>
// kernel: obe_head_forward.1
$region0: #{obe_head_forward.1}
  #allocation0 [shape = 'u32[]', space=smem, size = 0x4, offset = 0x4, fixed_abs, tag = 'smem constant byte address 0x4 - core index']
  #allocation1 [shape = 'u32[72,128]{1,0:T(1,128)}', space=vmem, size = 0x9000, scoped, tag = 'internal scratch']
  %s0 = inlined_call_operand.vmem [shape: bf16[256,256], index: 0, kind: input, shape index: {}]
  %s1 = inlined_call_operand.vmem [shape: f32[8,256], index: 1, kind: input, shape index: {}]
  %s2 = inlined_call_operand.vmem [shape: f32[8,256], index: 2, kind: output, shape index: {}]
  %s3 = sld [smem:[#allocation0]]
  $region18: #{obe_head_forward.1} parent=0
    _
  %s5 = ssub.s32 1, %s3
  %s6 = scalar_select 0, %s5, %s3
  // Predicated region
  $region2: #{obe_head_forward.1} parent=0 // pred_check
    _
  $region3: #{obe_head_forward.1} parent=0 // pred_check_branch
    %8 = sbr.rel (0) target = $region5
  $region4: #{obe_head_forward.1} parent=0 // pred_region
    _
  $region5: #{obe_head_forward.1} parent=0 // pred_fallthru
    _
  // Predicated region
  $region6: #{obe_head_forward.1} parent=0 // pred_check
    _
  $region7: #{obe_head_forward.1} parent=0 // pred_check_branch
    %10 = sbr.rel (0) target = $region9
  $region8: #{obe_head_forward.1} parent=0 // pred_region
    _
  $region9: #{obe_head_forward.1} parent=0 // pred_fallthru
    _
  %v11 = vld [vmem:[%s1] sm:$0xff]
  %v12 = vld [vmem:[%s1 + $0x8] sm:$0xff]
  %v13 = vpack.c.bf16 %v11, %v11
  %v14 = vpack.c.bf16 %v12, %v12
  %v15 = vld [vmem:[%s0] sm:$0xff]
  %v16 = vld [vmem:[%s0 + $0x8] sm:$0xff]
  %v17 = vld [vmem:[%s0 + $0x10] sm:$0xff]
  %v18 = vld [vmem:[%s0 + $0x18] sm:$0xff]
  %v19 = vld [vmem:[%s0 + $0x20] sm:$0xff]
  %v20 = vld [vmem:[%s0 + $0x28] sm:$0xff]
  %v21 = vld [vmem:[%s0 + $0x30] sm:$0xff]
  %v22 = vld [vmem:[%s0 + $0x38] sm:$0xff]
  %v23 = vld [vmem:[%s0 + $0x40] sm:$0xff]
  %v24 = vld [vmem:[%s0 + $0x48] sm:$0xff]
  %v25 = vld [vmem:[%s0 + $0x50] sm:$0xff]
  %v26 = vld [vmem:[%s0 + $0x58] sm:$0xff]
  %v27 = vld [vmem:[%s0 + $0x60] sm:$0xff]
  %v28 = vld [vmem:[%s0 + $0x68] sm:$0xff]
  %v29 = vld [vmem:[%s0 + $0x70] sm:$0xff]
  %v30 = vld [vmem:[%s0 + $0x78] sm:$0xff]
  %v31 = vld [vmem:[%s0 + $0x80] sm:$0xff]
  %v32 = vld [vmem:[%s0 + $0x88] sm:$0xff]
  %v33 = vld [vmem:[%s0 + $0x90] sm:$0xff]
  %v34 = vld [vmem:[%s0 + $0x98] sm:$0xff]
  %v35 = vld [vmem:[%s0 + $0xa0] sm:$0xff]
  %v36 = vld [vmem:[%s0 + $0xa8] sm:$0xff]
  %v37 = vld [vmem:[%s0 + $0xb0] sm:$0xff]
  %v38 = vld [vmem:[%s0 + $0xb8] sm:$0xff]
  %v39 = vld [vmem:[%s0 + $0xc0] sm:$0xff]
  %v40 = vld [vmem:[%s0 + $0xc8] sm:$0xff]
  %v41 = vld [vmem:[%s0 + $0xd0] sm:$0xff]
  %v42 = vld [vmem:[%s0 + $0xd8] sm:$0xff]
  %v43 = vld [vmem:[%s0 + $0xe0] sm:$0xff]
  %v44 = vld [vmem:[%s0 + $0xe8] sm:$0xff]
  %v45 = vld [vmem:[%s0 + $0xf0] sm:$0xff]
  %v46 = vld [vmem:[%s0 + $0xf8] sm:$0xff]
  %v79 = vunpack.c.l.b16 %v15
  %v80 = vunpack.c.h.b16 %v15
  %v81 = vunpack.c.l.b16 %v16
  %v82 = vunpack.c.h.b16 %v16
  %v83 = vunpack.c.l.b16 %v17
  %v84 = vunpack.c.h.b16 %v17
  %v85 = vunpack.c.l.b16 %v18
  %v86 = vunpack.c.h.b16 %v18
  %v87 = vunpack.c.l.b16 %v19
  %v88 = vunpack.c.h.b16 %v19
  %v89 = vunpack.c.l.b16 %v20
  %v90 = vunpack.c.h.b16 %v20
  %v91 = vunpack.c.l.b16 %v21
  %v92 = vunpack.c.h.b16 %v21
  %v93 = vunpack.c.l.b16 %v22
  %v94 = vunpack.c.h.b16 %v22
  %v95 = vunpack.c.l.b16 %v23
  %v96 = vunpack.c.h.b16 %v23
  %v97 = vunpack.c.l.b16 %v24
  %v98 = vunpack.c.h.b16 %v24
  %v99 = vunpack.c.l.b16 %v25
  %v100 = vunpack.c.h.b16 %v25
  %v101 = vunpack.c.l.b16 %v26
  %v102 = vunpack.c.h.b16 %v26
  %v103 = vunpack.c.l.b16 %v27
  %v104 = vunpack.c.h.b16 %v27
  %v105 = vunpack.c.l.b16 %v28
  %v106 = vunpack.c.h.b16 %v28
  %v107 = vunpack.c.l.b16 %v29
  %v108 = vunpack.c.h.b16 %v29
  %v109 = vunpack.c.l.b16 %v30
  %v110 = vunpack.c.h.b16 %v30
  %v111 = vunpack.c.l.b16 %v31
  %v112 = vunpack.c.h.b16 %v31
  %v113 = vunpack.c.l.b16 %v32
  %v114 = vunpack.c.h.b16 %v32
  %v115 = vunpack.c.l.b16 %v33
  %v116 = vunpack.c.h.b16 %v33
  %v117 = vunpack.c.l.b16 %v34
  %v118 = vunpack.c.h.b16 %v34
  %v119 = vunpack.c.l.b16 %v35
  %v120 = vunpack.c.h.b16 %v35
  %v121 = vunpack.c.l.b16 %v36
  %v122 = vunpack.c.h.b16 %v36
  %v123 = vunpack.c.l.b16 %v37
  %v124 = vunpack.c.h.b16 %v37
  %v125 = vunpack.c.l.b16 %v38
  %v126 = vunpack.c.h.b16 %v38
  %v127 = vunpack.c.l.b16 %v39
  %v128 = vunpack.c.h.b16 %v39
  %v129 = vunpack.c.l.b16 %v40
  %v130 = vunpack.c.h.b16 %v40
  %v131 = vunpack.c.l.b16 %v41
  %v132 = vunpack.c.h.b16 %v41
  %v133 = vunpack.c.l.b16 %v42
  %v134 = vunpack.c.h.b16 %v42
  %v135 = vunpack.c.l.b16 %v43
  %v136 = vunpack.c.h.b16 %v43
  %v137 = vunpack.c.l.b16 %v44
  %v138 = vunpack.c.h.b16 %v44
  %v139 = vunpack.c.l.b16 %v45
  %v140 = vunpack.c.h.b16 %v45
  %v141 = vunpack.c.l.b16 %v46
  %v142 = vunpack.c.h.b16 %v46
  %v143 = vpack.c.b16 %v81, %v79
  %v144 = vpack.c.b16 %v82, %v80
  %v145 = vpack.c.b16 %v85, %v83
  %v146 = vpack.c.b16 %v86, %v84
  %v147 = vpack.c.b16 %v89, %v87
  %v148 = vpack.c.b16 %v90, %v88
  %v149 = vpack.c.b16 %v93, %v91
  %v150 = vpack.c.b16 %v94, %v92
  %v151 = vpack.c.b16 %v97, %v95
  %v152 = vpack.c.b16 %v98, %v96
  %v153 = vpack.c.b16 %v101, %v99
  %v154 = vpack.c.b16 %v102, %v100
  %v155 = vpack.c.b16 %v105, %v103
  %v156 = vpack.c.b16 %v106, %v104
  %v157 = vpack.c.b16 %v109, %v107
  %v158 = vpack.c.b16 %v110, %v108
  %v159 = vpack.c.b16 %v113, %v111
  %v160 = vpack.c.b16 %v114, %v112
  %v161 = vpack.c.b16 %v117, %v115
  %v162 = vpack.c.b16 %v118, %v116
  %v163 = vpack.c.b16 %v121, %v119
  %v164 = vpack.c.b16 %v122, %v120
  %v165 = vpack.c.b16 %v125, %v123
  %v166 = vpack.c.b16 %v126, %v124
  %v167 = vpack.c.b16 %v129, %v127
  %v168 = vpack.c.b16 %v130, %v128
  %v169 = vpack.c.b16 %v133, %v131
  %v170 = vpack.c.b16 %v134, %v132
  %v171 = vpack.c.b16 %v137, %v135
  %v172 = vpack.c.b16 %v138, %v136
  %v173 = vpack.c.b16 %v141, %v139
  %v174 = vpack.c.b16 %v142, %v140
  %207 = vmatpush.bf16.msra.mxu0 %v157
  %208 = vmatpush.bf16.msra.mxu0 %v155
  %209 = vmatpush.bf16.msra.mxu0 %v153
  %210 = vmatpush.bf16.msra.mxu0 %v151
  %211 = vmatpush.bf16.msra.mxu0 %v149
  %212 = vmatpush.bf16.msra.mxu0 %v147
  %213 = vmatpush.bf16.msra.mxu0 %v145
  %214 = vmatpush.bf16.msra.mxu0 %v143
  %215 = vmatmul.bf16.gmra.mxu0 %v13
  %v216 = vpop.f32.mrf.mxu0
  %v217 = vadd.f32 0.0, %v216
  %v218 = vpop.f32.mrf.mxu0
  %219 = vdwg.mxu0
  %220 = vmatpush.bf16.msra.mxu0 %v173
  %221 = vmatpush.bf16.msra.mxu0 %v171
  %222 = vmatpush.bf16.msra.mxu0 %v169
  %223 = vmatpush.bf16.msra.mxu0 %v167
  %224 = vmatpush.bf16.msra.mxu0 %v165
  %225 = vmatpush.bf16.msra.mxu0 %v163
  %226 = vmatpush.bf16.msra.mxu0 %v161
  %227 = vmatpush.bf16.msra.mxu0 %v159
  %228 = vmatmul.bf16.gmra.mxu0 %v14
  %v229 = vpop.f32.mrf.mxu0
  %v230 = vadd.f32 %v217, %v229
  %v231 = vpop.f32.mrf.mxu0
  %232 = vdwg.mxu0
  %233 = vmatpush.bf16.msra.mxu0 %v158
  %234 = vmatpush.bf16.msra.mxu0 %v156
  %235 = vmatpush.bf16.msra.mxu0 %v154
  %236 = vmatpush.bf16.msra.mxu0 %v152
  %237 = vmatpush.bf16.msra.mxu0 %v150
  %238 = vmatpush.bf16.msra.mxu0 %v148
  %239 = vmatpush.bf16.msra.mxu0 %v146
  %240 = vmatpush.bf16.msra.mxu0 %v144
  %241 = vmatmul.bf16.gmra.mxu0 %v13
  %v242 = vpop.f32.mrf.mxu0
  %v243 = vadd.f32 0.0, %v242
  %v244 = vpop.f32.mrf.mxu0
  %245 = vdwg.mxu0
  %246 = vmatpush.bf16.msra.mxu0 %v174
  %247 = vmatpush.bf16.msra.mxu0 %v172
  %248 = vmatpush.bf16.msra.mxu0 %v170
  %249 = vmatpush.bf16.msra.mxu0 %v168
  %250 = vmatpush.bf16.msra.mxu0 %v166
  %251 = vmatpush.bf16.msra.mxu0 %v164
  %252 = vmatpush.bf16.msra.mxu0 %v162
  %253 = vmatpush.bf16.msra.mxu0 %v160
  %254 = vmatmul.bf16.gmra.mxu0 %v14
  %v255 = vpop.f32.mrf.mxu0
  %v256 = vadd.f32 %v243, %v255
  %v257 = vpop.f32.mrf.mxu0
  %258 = vdwg.mxu0
  %259 = vst [vmem:[%s2] sm:$0xff] %v230
  %260 = vst [vmem:[%s2 + $0x8] sm:$0xff] %v256
  // Predicated region
  $region10: #{obe_head_forward.1} parent=0 // pred_check
    _
  $region11: #{obe_head_forward.1} parent=0 // pred_check_branch
    %262 = sbr.rel (0) target = $region13
  $region12: #{obe_head_forward.1} parent=0 // pred_region
    _
  $region13: #{obe_head_forward.1} parent=0 // pred_fallthru
    _
  // Predicated region
  $region14: #{obe_head_forward.1} parent=0 // pred_check
    _
  $region15: #{obe_head_forward.1} parent=0 // pred_check_branch
    %264 = sbr.rel (0) target = $region17
  $region16: #{obe_head_forward.1} parent=0 // pred_region
    _
  $region17: #{obe_head_forward.1} parent=0 // pred_fallthru
    _

</llo_original>
